<compile_context>
chip_gen: v5e
topology: v5e:2x2
jax: 0.10.0
libtpu: 0.0.40
codegen_flags: <defaults>
</compile_context>

<pallas_src>
import functools

import jax
import jax.numpy as jnp
from jax.experimental import pallas as pl
from jax.experimental.pallas import tpu as pltpu

SELU_ALPHA = 1.6732632423543772
SELU_SCALE = 1.0507009873554804


def _selu(h):
    # SELU: scale * (h if h > 0 else alpha * (exp(h) - 1));  exp goes to the EUP.
    return SELU_SCALE * jnp.where(h > 0.0, h, SELU_ALPHA * (jnp.exp(h) - 1.0))


def _mlp_kernel(p_ref, x_ref, o_ref):
    # p_ref: (13,) f32 in SMEM, packed [w1 (2x4 row-major, PyTorch (out,in)),
    #                                   b1 (2), w2 (1x2), b2 (1)]
    # x_ref: (4, TM) f32 in VMEM  -- features on sublanes, batch on lanes
    # o_ref: (1, TM) f32 in VMEM  -- lane-dense output
    x0 = x_ref[0:1, :]
    x1 = x_ref[1:2, :]
    x2 = x_ref[2:3, :]
    x3 = x_ref[3:4, :]

    # lin1 (4 -> 2) as VPU FMAs with SMEM scalar broadcasts (MXU skipped on purpose).
    h0 = p_ref[0] * x0 + p_ref[1] * x1 + p_ref[2] * x2 + p_ref[3] * x3 + p_ref[8]
    h1 = p_ref[4] * x0 + p_ref[5] * x1 + p_ref[6] * x2 + p_ref[7] * x3 + p_ref[9]

    h0 = _selu(h0)
    h1 = _selu(h1)

    # lin2 (2 -> 1)
    z = p_ref[10] * h0 + p_ref[11] * h1 + p_ref[12]

    # sigmoid(z) = 1 / (1 + exp(-z)); approx reciprocal uses the EUP slot.
    o_ref[...] = pl.reciprocal(1.0 + jnp.exp(-z), approx=True)


def _round_up(a, m):
    return (a + m - 1) // m * m


@functools.partial(jax.jit, static_argnames=("tm",))
def mlp_forward(x, w1, b1, w2, b2, tm=512):
    """x: (N, 4) f32. Weights in PyTorch layout: w1 (2,4), b1 (2,), w2 (1,2), b2 (1,)."""
    n = x.shape[0]
    # Lane tile: multiple of 128, up to `tm` (512 keeps VMEM tiny even on v7x's 64 MiB).
    tile = min(tm, _round_up(max(n, 1), 128))
    n_pad = _round_up(n, tile)

    xt = jnp.transpose(x)                                   # (4, N): batch on lanes
    xt = jnp.pad(xt, ((0, 0), (0, n_pad - n)))              # pad batch to tile multiple

    params = jnp.concatenate(
        [w1.reshape(-1), b1.reshape(-1), w2.reshape(-1), b2.reshape(-1)]
    ).astype(jnp.float32)                                   # (13,) scalars for SMEM

    out = pl.pallas_call(
        _mlp_kernel,
        out_shape=jax.ShapeDtypeStruct((1, n_pad), jnp.float32),
        grid=(n_pad // tile,),
        in_specs=[
            pl.BlockSpec(memory_space=pltpu.MemorySpace.SMEM),      # 13 scalars, whole array
            pl.BlockSpec((4, tile), lambda i: (0, i)),              # batch tile of x
        ],
        out_specs=pl.BlockSpec((1, tile), lambda i: (0, i)),        # lane-dense output tile
        compiler_params=pltpu.CompilerParams(
            dimension_semantics=("parallel",),                      # megacore split on v7x
        ),
    )(params, xt)

    return out[0, :n].reshape(n, 1)


def init_params():
    # Deterministic init mimicking nn.Linear's uniform(-1/sqrt(fan_in), 1/sqrt(fan_in)),
    # stored in PyTorch layout (out_features, in_features).
    key = jax.random.PRNGKey(0)
    k1, k2, k3, k4 = jax.random.split(key, 4)
    bound1 = 1.0 / jnp.sqrt(4.0)
    bound2 = 1.0 / jnp.sqrt(2.0)
    w1 = jax.random.uniform(k1, (2, 4), jnp.float32, -bound1, bound1)
    b1 = jax.random.uniform(k2, (2,), jnp.float32, -bound1, bound1)
    w2 = jax.random.uniform(k3, (1, 2), jnp.float32, -bound2, bound2)
    b2 = jax.random.uniform(k4, (1,), jnp.float32, -bound2, bound2)
    return w1, b1, w2, b2


if __name__ == "__main__":
    key = jax.random.PRNGKey(0)
    x = jax.random.normal(jax.random.fold_in(key, 7), (8, 4), jnp.float32)

    w1, b1, w2, b2 = init_params()
    out = mlp_forward(x, w1, b1, w2, b2)
    out = jax.block_until_ready(out)

    # Pure-JAX reference (same semantics as the PyTorch module).
    h = x @ w1.T + b1
    h = SELU_SCALE * jnp.where(h > 0, h, SELU_ALPHA * (jnp.exp(h) - 1.0))
    ref = jax.nn.sigmoid(h @ w2.T + b2)

    assert out.shape == (8, 1)
    # approx reciprocal (EUP) is ~2^-12 relative accuracy; tolerance set accordingly.
    assert jnp.allclose(out, ref, atol=2e-3), "mismatch vs reference"
    print("KERNEL_OK")
</pallas_src>

<mosaic_0001>
module attributes {stable_mosaic.version = 11 : i64} {
  func.func @_mlp_kernel(%arg0: i32, %arg1: memref<13xf32, #tpu.memory_space<smem>>, %arg2: memref<4x128xf32, #tpu.memory_space<vmem>>, %arg3: memref<1x128xf32, #tpu.memory_space<vmem>>) attributes {dimension_semantics = [#tpu.dimension_semantics<parallel>], iteration_bounds = array<i64: 1>, scalar_prefetch = 0 : i64, scratch_operands = 0 : i64, tpu.core_type = #tpu.core_type<tc>, window_params = [{transform_indices = @transform_0, window_bounds = array<i64: 13>}, {transform_indices = @transform_1, window_bounds = array<i64: 4, 128>}, {transform_indices = @transform_2, window_bounds = array<i64: 1, 128>}]} {
    %c0 = arith.constant 0 : index
    %c0_0 = arith.constant 0 : index
    %0 = vector.load %arg2[%c0, %c0_0] : memref<4x128xf32, #tpu.memory_space<vmem>>, vector<1x128xf32>
    %c1 = arith.constant 1 : index
    %c0_1 = arith.constant 0 : index
    %1 = vector.load %arg2[%c1, %c0_1] : memref<4x128xf32, #tpu.memory_space<vmem>>, vector<1x128xf32>
    %c2 = arith.constant 2 : index
    %c0_2 = arith.constant 0 : index
    %2 = vector.load %arg2[%c2, %c0_2] : memref<4x128xf32, #tpu.memory_space<vmem>>, vector<1x128xf32>
    %c3 = arith.constant 3 : index
    %c0_3 = arith.constant 0 : index
    %3 = vector.load %arg2[%c3, %c0_3] : memref<4x128xf32, #tpu.memory_space<vmem>>, vector<1x128xf32>
    %c0_4 = arith.constant 0 : index
    %4 = memref.load %arg1[%c0_4] : memref<13xf32, #tpu.memory_space<smem>>
    %5 = vector.broadcast %4 : f32 to vector<1x128xf32>
    %6 = arith.mulf %5, %0 : vector<1x128xf32>
    %c1_5 = arith.constant 1 : index
    %7 = memref.load %arg1[%c1_5] : memref<13xf32, #tpu.memory_space<smem>>
    %8 = vector.broadcast %7 : f32 to vector<1x128xf32>
    %9 = arith.mulf %8, %1 : vector<1x128xf32>
    %10 = arith.addf %6, %9 : vector<1x128xf32>
    %c2_6 = arith.constant 2 : index
    %11 = memref.load %arg1[%c2_6] : memref<13xf32, #tpu.memory_space<smem>>
    %12 = vector.broadcast %11 : f32 to vector<1x128xf32>
    %13 = arith.mulf %12, %2 : vector<1x128xf32>
    %14 = arith.addf %10, %13 : vector<1x128xf32>
    %c3_7 = arith.constant 3 : index
    %15 = memref.load %arg1[%c3_7] : memref<13xf32, #tpu.memory_space<smem>>
    %16 = vector.broadcast %15 : f32 to vector<1x128xf32>
    %17 = arith.mulf %16, %3 : vector<1x128xf32>
    %18 = arith.addf %14, %17 : vector<1x128xf32>
    %c8 = arith.constant 8 : index
    %19 = memref.load %arg1[%c8] : memref<13xf32, #tpu.memory_space<smem>>
    %20 = vector.broadcast %19 : f32 to vector<1x128xf32>
    %21 = arith.addf %18, %20 : vector<1x128xf32>
    %c4 = arith.constant 4 : index
    %22 = memref.load %arg1[%c4] : memref<13xf32, #tpu.memory_space<smem>>
    %23 = vector.broadcast %22 : f32 to vector<1x128xf32>
    %24 = arith.mulf %23, %0 : vector<1x128xf32>
    %c5 = arith.constant 5 : index
    %25 = memref.load %arg1[%c5] : memref<13xf32, #tpu.memory_space<smem>>
    %26 = vector.broadcast %25 : f32 to vector<1x128xf32>
    %27 = arith.mulf %26, %1 : vector<1x128xf32>
    %28 = arith.addf %24, %27 : vector<1x128xf32>
    %c6 = arith.constant 6 : index
    %29 = memref.load %arg1[%c6] : memref<13xf32, #tpu.memory_space<smem>>
    %30 = vector.broadcast %29 : f32 to vector<1x128xf32>
    %31 = arith.mulf %30, %2 : vector<1x128xf32>
    %32 = arith.addf %28, %31 : vector<1x128xf32>
    %c7 = arith.constant 7 : index
    %33 = memref.load %arg1[%c7] : memref<13xf32, #tpu.memory_space<smem>>
    %34 = vector.broadcast %33 : f32 to vector<1x128xf32>
    %35 = arith.mulf %34, %3 : vector<1x128xf32>
    %36 = arith.addf %32, %35 : vector<1x128xf32>
    %c9 = arith.constant 9 : index
    %37 = memref.load %arg1[%c9] : memref<13xf32, #tpu.memory_space<smem>>
    %38 = vector.broadcast %37 : f32 to vector<1x128xf32>
    %39 = arith.addf %36, %38 : vector<1x128xf32>
    %cst = arith.constant 0.000000e+00 : f32
    %40 = vector.broadcast %cst : f32 to vector<1x128xf32>
    %41 = arith.cmpf ogt, %21, %40 : vector<1x128xf32>
    %42 = math.exp %21 : vector<1x128xf32>
    %cst_8 = arith.constant 1.000000e+00 : f32
    %43 = vector.broadcast %cst_8 : f32 to vector<1x128xf32>
    %44 = arith.subf %42, %43 : vector<1x128xf32>
    %cst_9 = arith.constant 1.67326319 : f32
    %45 = vector.broadcast %cst_9 : f32 to vector<1x128xf32>
    %46 = arith.mulf %45, %44 : vector<1x128xf32>
    %47 = arith.select %41, %21, %46 : vector<1x128xi1>, vector<1x128xf32>
    %cst_10 = arith.constant 1.05070102 : f32
    %48 = vector.broadcast %cst_10 : f32 to vector<1x128xf32>
    %49 = arith.mulf %48, %47 : vector<1x128xf32>
    %cst_11 = arith.constant 0.000000e+00 : f32
    %50 = vector.broadcast %cst_11 : f32 to vector<1x128xf32>
    %51 = arith.cmpf ogt, %39, %50 : vector<1x128xf32>
    %52 = math.exp %39 : vector<1x128xf32>
    %cst_12 = arith.constant 1.000000e+00 : f32
    %53 = vector.broadcast %cst_12 : f32 to vector<1x128xf32>
    %54 = arith.subf %52, %53 : vector<1x128xf32>
    %cst_13 = arith.constant 1.67326319 : f32
    %55 = vector.broadcast %cst_13 : f32 to vector<1x128xf32>
    %56 = arith.mulf %55, %54 : vector<1x128xf32>
    %57 = arith.select %51, %39, %56 : vector<1x128xi1>, vector<1x128xf32>
    %cst_14 = arith.constant 1.05070102 : f32
    %58 = vector.broadcast %cst_14 : f32 to vector<1x128xf32>
    %59 = arith.mulf %58, %57 : vector<1x128xf32>
    %c10 = arith.constant 10 : index
    %60 = memref.load %arg1[%c10] : memref<13xf32, #tpu.memory_space<smem>>
    %61 = vector.broadcast %60 : f32 to vector<1x128xf32>
    %62 = arith.mulf %61, %49 : vector<1x128xf32>
    %c11 = arith.constant 11 : index
    %63 = memref.load %arg1[%c11] : memref<13xf32, #tpu.memory_space<smem>>
    %64 = vector.broadcast %63 : f32 to vector<1x128xf32>
    %65 = arith.mulf %64, %59 : vector<1x128xf32>
    %66 = arith.addf %62, %65 : vector<1x128xf32>
    %c12 = arith.constant 12 : index
    %67 = memref.load %arg1[%c12] : memref<13xf32, #tpu.memory_space<smem>>
    %68 = vector.broadcast %67 : f32 to vector<1x128xf32>
    %69 = arith.addf %66, %68 : vector<1x128xf32>
    %cst_15 = arith.constant 0.000000e+00 : f32
    %70 = vector.broadcast %cst_15 : f32 to vector<1x128xf32>
    %71 = arith.subf %70, %69 : vector<1x128xf32>
    %72 = math.exp %71 : vector<1x128xf32>
    %cst_16 = arith.constant 1.000000e+00 : f32
    %73 = vector.broadcast %cst_16 : f32 to vector<1x128xf32>
    %74 = arith.addf %73, %72 : vector<1x128xf32>
    %75 = tpu.reciprocal %74 {approx = true} : vector<1x128xf32> -> vector<1x128xf32>
    %c0_17 = arith.constant 0 : index
    %c0_18 = arith.constant 0 : index
    %76 = vector.load %arg3[%c0_17, %c0_18] : memref<1x128xf32, #tpu.memory_space<vmem>>, vector<1x128xf32>
    tpu.vector_store %arg3[%c0_17, %c0_18], %75 {strides = array<i32>} : memref<1x128xf32, #tpu.memory_space<vmem>>, vector<1x128xf32>,
    return
  }
  func.func @transform_0(%arg0: i32) -> i32 {
    %c0_i32 = arith.constant 0 : i32
    %c0_i32_0 = arith.constant 0 : i32
    return %c0_i32 : i32
  }
  func.func @transform_1(%arg0: i32) -> (i32, i32) {
    %c0_i32 = arith.constant 0 : i32
    %c0_i32_0 = arith.constant 0 : i32
    return %c0_i32, %arg0 : i32, i32
  }
  func.func @transform_2(%arg0: i32) -> (i32, i32) {
    %c0_i32 = arith.constant 0 : i32
    %c0_i32_0 = arith.constant 0 : i32
    return %c0_i32, %arg0 : i32, i32
  }
}

</mosaic_0001>

<llo_original>
// kernel: mlp_forward.1
$region0: #{mlp_forward.1}
  #allocation0 [shape = 'u32[]', space=smem, size = 0x4, offset = 0x4, fixed_abs, tag = 'smem constant byte address 0x4 - core index']
  #allocation1 [shape = 'u32[72,128]{1,0:T(1,128)}', space=vmem, size = 0x9000, scoped, tag = 'internal scratch']
  %s0 = inlined_call_operand.vmem [shape: f32[13], index: 0, kind: input, shape index: {}]
  %s1 = inlined_call_operand.vmem [shape: f32[4,128], index: 1, kind: input, shape index: {}]
  %s2 = inlined_call_operand.vmem [shape: f32[1,128], index: 2, kind: output, shape index: {}]
  %s3 = sld [smem:[#allocation0]]
  $region22: #{mlp_forward.1} parent=0
    _
  %s5 = ssub.s32 1, %s3
  %s6 = scalar_select 0, %s5, %s3
  $region1: #{mlp_forward.1} parent=0
    #allocation2 [shape = 'u8[512]{0}', space=smem, size = 0x200, scoped, tag = 'input window, operand 0, single buffered']
    #allocation3 [shape = 's32[1]{0}', space=sflag, size = 0x4, scoped, tag = 'scoped memory for mlp_forward.1']
    %7 = vsyncpa [#allocation3], 0
    // Predicated region
    $region2: #{mlp_forward.1} parent=1 // pred_check
      _
    $region3: #{mlp_forward.1} parent=1 // pred_check_branch
      %9 = sbr.rel (0) target = $region5
    $region4: #{mlp_forward.1} parent=1 // pred_region
      %11 = vsyncadd [#allocation3], 0
      %s13 = sshll.u32 %s0, 4
      %s14 = int_to_ptr.vmem [resolvable:$true] %s13
      %16 = dma.vmem_to_smem %s14, 16, [#allocation2], [#allocation3]
    $region5: #{mlp_forward.1} parent=1 // pred_fallthru
      _
    // Predicated region
    $region6: #{mlp_forward.1} parent=1 // pred_check
      _
    $region7: #{mlp_forward.1} parent=1 // pred_check_branch
      %18 = sbr.rel (0) target = $region9
    $region8: #{mlp_forward.1} parent=1 // pred_region
      _
    $region9: #{mlp_forward.1} parent=1 // pred_fallthru
      _
    // Predicated region
    $region10: #{mlp_forward.1} parent=1 // pred_check
      _
    $region11: #{mlp_forward.1} parent=1 // pred_check_branch
      %20 = sbr.rel (0) target = $region13
    $region12: #{mlp_forward.1} parent=1 // pred_region
      %22 = dma.done [#allocation3], 16
    $region13: #{mlp_forward.1} parent=1 // pred_fallthru
      _
    %23 = sfence
    %v24 = vld [vmem:[%s1] sm:$0x1]
    %v25 = vld [vmem:[%s1 + $0x1] sm:$0x1]
    %v26 = vld [vmem:[%s1 + $0x2] sm:$0x1]
    %v27 = vld [vmem:[%s1 + $0x3] sm:$0x1]
    %s28 = sld [smem:[#allocation2]]
    %v29 = vstv %s28
    %v30 = vmul.f32 %v29, %v24
    %s31 = sld [smem:[#allocation2 + $0x1]]
    %v32 = vstv %s31
    %v33 = vmul.f32 %v32, %v25
    %v34 = vadd.f32 %v30, %v33
    %s35 = sld [smem:[#allocation2 + $0x2]]
    %v36 = vstv %s35
    %v37 = vmul.f32 %v36, %v26
    %v38 = vadd.f32 %v34, %v37
    %s39 = sld [smem:[#allocation2 + $0x3]]
    %v40 = vstv %s39
    %v41 = vmul.f32 %v40, %v27
    %v42 = vadd.f32 %v38, %v41
    %s43 = sld [smem:[#allocation2 + $0x8]]
    %v44 = vstv %s43
    %v45 = vadd.f32 %v42, %v44
    %s46 = sld [smem:[#allocation2 + $0x4]]
    %v47 = vstv %s46
    %v48 = vmul.f32 %v47, %v24
    %s49 = sld [smem:[#allocation2 + $0x5]]
    %v50 = vstv %s49
    %v51 = vmul.f32 %v50, %v25
    %v52 = vadd.f32 %v48, %v51
    %s53 = sld [smem:[#allocation2 + $0x6]]
    %v54 = vstv %s53
    %v55 = vmul.f32 %v54, %v26
    %v56 = vadd.f32 %v52, %v55
    %s57 = sld [smem:[#allocation2 + $0x7]]
    %v58 = vstv %s57
    %v59 = vmul.f32 %v58, %v27
    %v60 = vadd.f32 %v56, %v59
    %s61 = sld [smem:[#allocation2 + $0x9]]
    %v62 = vstv %s61
    %v63 = vadd.f32 %v60, %v62
    %vm64 = vcmp.gt.f32.partialorder %v45, 0.0
    %v65 = vmul.f32 %v45, 1.442695
    %v66 = vpow.pop %v65
    %v67 = vsub.f32 %v66, 1.0
    %v68 = vmul.f32 %v67, 1.6732632
    %v69 = vsel %vm64, %v45, %v68
    %v70 = vmul.f32 %v69, 1.050701
    %vm71 = vcmp.gt.f32.partialorder %v63, 0.0
    %v72 = vmul.f32 %v63, 1.442695
    %v73 = vpow.pop %v72
    %v74 = vsub.f32 %v73, 1.0
    %v75 = vmul.f32 %v74, 1.6732632
    %v76 = vsel %vm71, %v63, %v75
    %v77 = vmul.f32 %v76, 1.050701
    %s78 = sld [smem:[#allocation2 + $0xa]]
    %v79 = vstv %s78
    %v80 = vmul.f32 %v79, %v70
    %s81 = sld [smem:[#allocation2 + $0xb]]
    %v82 = vstv %s81
    %v83 = vmul.f32 %v82, %v77
    %v84 = vadd.f32 %v80, %v83
    %s85 = sld [smem:[#allocation2 + $0xc]]
    %v86 = vstv %s85
    %v87 = vadd.f32 %v84, %v86
    %v88 = vsub.f32 0.0, %v87
    %v89 = vmul.f32 %v88, 1.442695
    %v90 = vpow.pop %v89
    %v91 = vadd.f32 %v90, 1.0
    %v92 = vrcp.pop %v91
    %93 = vst [vmem:[%s2] sm:$0x1] %v92
    // Predicated region
    $region14: #{mlp_forward.1} parent=1 // pred_check
      _
    $region15: #{mlp_forward.1} parent=1 // pred_check_branch
      %95 = sbr.rel (0) target = $region17
    $region16: #{mlp_forward.1} parent=1 // pred_region
      _
    $region17: #{mlp_forward.1} parent=1 // pred_fallthru
      _
    // Predicated region
    $region18: #{mlp_forward.1} parent=1 // pred_check
      _
    $region19: #{mlp_forward.1} parent=1 // pred_check_branch
      %97 = sbr.rel (0) target = $region21
    $region20: #{mlp_forward.1} parent=1 // pred_region
      _
    $region21: #{mlp_forward.1} parent=1 // pred_fallthru
      _
    %98 = vsyncpa [#allocation3], 1

</llo_original>
